<compile_context>
chip_gen: v7x
topology: tpu7x:2x2x1
jax: 0.10.0
libtpu: 0.0.40
codegen_flags: <defaults>
</compile_context>

<pallas_src>
import functools

import jax
import jax.numpy as jnp
from jax.experimental import pallas as pl
from jax.experimental.pallas import tpu as pltpu


def _round_up(x, m):
    return ((x + m - 1) // m) * m


def _bce_vtb_kernel(*refs, apply_weight: bool, b_valid: int, a_valid: int):
    if apply_weight:
        logits_ref, targets_ref, exp_r_ref, exp_1mr_ref, loss_m_ref, ps_ref = refs
    else:
        logits_ref, targets_ref, loss_m_ref, ps_ref = refs

    x = logits_ref[...].astype(jnp.float32)
    t = targets_ref[...].astype(jnp.float32)

    # Numerically stable binary_cross_entropy_with_logits, reduction='none':
    #   max(x, 0) - x*t + log(1 + exp(-|x|))
    loss = jnp.maximum(x, 0.0) - x * t + jnp.log1p(jnp.exp(-jnp.abs(x)))

    if apply_weight:
        # ratio2weight: exp(mask*(1-ratio) + (1-mask)*ratio); exps hoisted to
        # the wrapper -> a single vector select per element in-kernel.
        w = jnp.where(t > 0.5, exp_1mr_ref[...], exp_r_ref[...])
        w = jnp.where(t > 1.0, 0.0, w)  # zero weight on ignore labels (targets > 1)
        loss = loss * w

    tb, a_pad = loss.shape
    need_col_mask = a_valid != a_pad          # A was padded up to a multiple of 128
    need_row_mask = (b_valid % tb) != 0       # last tile contains padding rows
    if need_col_mask or need_row_mask:
        valid = jnp.ones(loss.shape, dtype=jnp.bool_)
        if need_col_mask:
            col = jax.lax.broadcasted_iota(jnp.int32, loss.shape, 1)
            valid = jnp.logical_and(valid, col < a_valid)
        if need_row_mask:
            row = (jax.lax.broadcasted_iota(jnp.int32, loss.shape, 0)
                   + pl.program_id(0) * tb)
            valid = jnp.logical_and(valid, row < b_valid)
        loss = jnp.where(valid, loss, 0.0)

    loss_m_ref[...] = loss.astype(loss_m_ref.dtype)
    # Per-tile partial sum, broadcast into an (8,128)-aligned lane-dense block;
    # reduced across tiles outside the kernel (keeps grid axis "parallel").
    ps_ref[...] = jnp.full(ps_ref.shape, jnp.sum(loss), dtype=jnp.float32)


def bce_loss_vtb(logits, targets, sample_weight=None, size_average=True,
                 attr_idx=None):
    """Pallas implementation of BCELoss_VTB.forward. Returns ([loss], [loss_m])."""
    B, A = logits.shape
    apply_weight = sample_weight is not None

    # TODO(synk): attr_idx sub-selection path (shape-mismatch branch) not
    # implemented; only the common full-attribute path is reproduced.
    del attr_idx

    # --- tiling / padding -----------------------------------------------------
    A_pad = _round_up(A, 128)
    # (2 inputs + 1 big output) x 2 pipeline buffers, f32 -> keep under ~6 MiB,
    # comfortably inside the smallest default scoped VMEM (16 MiB on v5e).
    budget_rows = (6 * 1024 * 1024) // (3 * 2 * 4 * A_pad)
    TB = min(1024, max(8, budget_rows))
    TB = (TB // 8) * 8
    TB = min(TB, _round_up(B, 8))
    TB = max(8, TB)
    B_pad = _round_up(B, TB)
    num_tiles = B_pad // TB

    pad_b, pad_a = B_pad - B, A_pad - A
    if pad_b or pad_a:
        logits_p = jnp.pad(logits, ((0, pad_b), (0, pad_a)))
        targets_p = jnp.pad(targets, ((0, pad_b), (0, pad_a)))
    else:
        logits_p, targets_p = logits, targets

    inputs = [logits_p, targets_p]
    in_specs = [
        pl.BlockSpec((TB, A_pad), lambda i: (i, 0)),
        pl.BlockSpec((TB, A_pad), lambda i: (i, 0)),
    ]
    if apply_weight:
        ratio = jnp.asarray(sample_weight, jnp.float32).reshape(1, A)
        exp_r = jnp.pad(jnp.exp(ratio), ((0, 0), (0, pad_a)))
        exp_1mr = jnp.pad(jnp.exp(1.0 - ratio), ((0, 0), (0, pad_a)))
        inputs += [exp_r, exp_1mr]
        in_specs += [
            pl.BlockSpec((1, A_pad), lambda i: (0, 0)),
            pl.BlockSpec((1, A_pad), lambda i: (0, 0)),
        ]

    kernel = functools.partial(_bce_vtb_kernel, apply_weight=apply_weight,
                               b_valid=B, a_valid=A)

    loss_m_p, partial = pl.pallas_call(
        kernel,
        out_shape=(
            jax.ShapeDtypeStruct((B_pad, A_pad), logits.dtype),
            jax.ShapeDtypeStruct((num_tiles, 8, 128), jnp.float32),
        ),
        grid_spec=pltpu.PrefetchScalarGridSpec(
            num_scalar_prefetch=0,
            grid=(num_tiles,),
            in_specs=in_specs,
            out_specs=(
                pl.BlockSpec((TB, A_pad), lambda i: (i, 0)),
                pl.BlockSpec((1, 8, 128), lambda i: (i, 0, 0)),
            ),
        ),
        compiler_params=pltpu.CompilerParams(
            dimension_semantics=("parallel",)),
    )(*inputs)

    total = jnp.sum(partial[:, 0, 0])
    loss = total / B if size_average else total
    loss_m = loss_m_p[:B, :A]
    return ([loss], [loss_m])


def _reference(logits, targets, sample_weight, size_average=True):
    x = logits.astype(jnp.float32)
    t = targets.astype(jnp.float32)
    loss_m = jnp.maximum(x, 0.0) - x * t + jnp.log1p(jnp.exp(-jnp.abs(x)))
    if sample_weight is not None:
        ratio = jnp.asarray(sample_weight, jnp.float32)[None, :]
        mask = jnp.where(t > 0.5, 1.0, 0.0)
        w = jnp.exp(mask * (1.0 - ratio) + (1.0 - mask) * ratio)
        w = jnp.where(t > 1.0, 0.0, w)
        loss_m = loss_m * w
    loss = loss_m.sum() / logits.shape[0] if size_average else loss_m.sum()
    return loss, loss_m


if __name__ == "__main__":
    key = jax.random.PRNGKey(0)
    k1, k2, k3, k4, k5 = jax.random.split(key, 5)

    # Case 1: non-aligned shapes (exercise row/col padding + masking).
    B, A = 6, 26
    logits = jax.random.normal(k1, (B, A), jnp.float32)
    targets = (jax.random.uniform(k2, (B, A)) > 0.5).astype(jnp.float32)
    sample_weight = jax.random.uniform(k3, (A,), jnp.float32,
                                       minval=0.05, maxval=0.95)

    (loss_list, loss_m_list) = bce_loss_vtb(
        logits, targets, sample_weight=sample_weight, size_average=True)
    loss = jax.block_until_ready(loss_list[0])
    loss_m = jax.block_until_ready(loss_m_list[0])
    ref_loss, ref_loss_m = _reference(logits, targets, sample_weight)
    assert jnp.allclose(loss, ref_loss, rtol=1e-5, atol=1e-5), (loss, ref_loss)
    assert jnp.allclose(loss_m, ref_loss_m, rtol=1e-5, atol=1e-5)

    # Case 1b: sample_weight=None path (ratio inputs dropped entirely).
    (loss_nw, loss_m_nw) = bce_loss_vtb(logits, targets, None, True)
    jax.block_until_ready(loss_nw[0])
    ref_loss_nw, ref_loss_m_nw = _reference(logits, targets, None)
    assert jnp.allclose(loss_nw[0], ref_loss_nw, rtol=1e-5, atol=1e-5)
    assert jnp.allclose(loss_m_nw[0], ref_loss_m_nw, rtol=1e-5, atol=1e-5)

    # Case 2: aligned shapes (no masking path), size_average=False.
    B2, A2 = 16, 128
    logits2 = jax.random.normal(k4, (B2, A2), jnp.float32)
    targets2 = (jax.random.uniform(k5, (B2, A2)) > 0.5).astype(jnp.float32)
    sw2 = jnp.linspace(0.1, 0.9, A2, dtype=jnp.float32)
    (loss2, loss_m2) = bce_loss_vtb(logits2, targets2, sw2, size_average=False)
    jax.block_until_ready(loss2[0])
    ref_loss2, ref_loss_m2 = _reference(logits2, targets2, sw2,
                                        size_average=False)
    assert jnp.allclose(loss2[0], ref_loss2, rtol=1e-5, atol=1e-5)
    assert jnp.allclose(loss_m2[0], ref_loss_m2, rtol=1e-5, atol=1e-5)

    print("KERNEL_OK")
</pallas_src>

<mosaic_0001>
module attributes {stable_mosaic.version = 11 : i64} {
  func.func @_bce_vtb_kernel(%arg0: i32, %arg1: memref<8x128xf32, #tpu.memory_space<vmem>>, %arg2: memref<8x128xf32, #tpu.memory_space<vmem>>, %arg3: memref<1x128xf32, #tpu.memory_space<vmem>>, %arg4: memref<1x128xf32, #tpu.memory_space<vmem>>, %arg5: memref<8x128xf32, #tpu.memory_space<vmem>>, %arg6: memref<1x8x128xf32, #tpu.memory_space<vmem>>) attributes {dimension_semantics = [#tpu.dimension_semantics<parallel>], iteration_bounds = array<i64: 1>, scalar_prefetch = 0 : i64, scratch_operands = 0 : i64, tpu.core_type = #tpu.core_type<tc>, window_params = [{transform_indices = @transform_0, window_bounds = array<i64: 8, 128>}, {transform_indices = @transform_1, window_bounds = array<i64: 8, 128>}, {pipeline_mode = #tpu.pipeline_mode<synchronous>, transform_indices = @transform_2, window_bounds = array<i64: 1, 128>}, {pipeline_mode = #tpu.pipeline_mode<synchronous>, transform_indices = @transform_3, window_bounds = array<i64: 1, 128>}, {transform_indices = @transform_4, window_bounds = array<i64: 8, 128>}, {transform_indices = @transform_5, window_bounds = array<i64: 1, 8, 128>}]} {
    %c0 = arith.constant 0 : index
    %c0_0 = arith.constant 0 : index
    %0 = vector.load %arg1[%c0, %c0_0] : memref<8x128xf32, #tpu.memory_space<vmem>>, vector<8x128xf32>
    %c0_1 = arith.constant 0 : index
    %c0_2 = arith.constant 0 : index
    %1 = vector.load %arg2[%c0_1, %c0_2] : memref<8x128xf32, #tpu.memory_space<vmem>>, vector<8x128xf32>
    %cst = arith.constant 0.000000e+00 : f32
    %2 = vector.broadcast %cst : f32 to vector<8x128xf32>
    %3 = arith.maximumf %0, %2 : vector<8x128xf32>
    %4 = arith.mulf %0, %1 : vector<8x128xf32>
    %5 = arith.subf %3, %4 : vector<8x128xf32>
    %6 = math.absf %0 : vector<8x128xf32>
    %cst_3 = arith.constant 0.000000e+00 : f32
    %7 = vector.broadcast %cst_3 : f32 to vector<8x128xf32>
    %8 = arith.subf %7, %6 : vector<8x128xf32>
    %9 = math.exp %8 : vector<8x128xf32>
    %10 = math.log1p %9 : vector<8x128xf32>
    %11 = arith.addf %5, %10 : vector<8x128xf32>
    %cst_4 = arith.constant 5.000000e-01 : f32
    %12 = vector.broadcast %cst_4 : f32 to vector<8x128xf32>
    %13 = arith.cmpf ogt, %1, %12 : vector<8x128xf32>
    %c0_5 = arith.constant 0 : index
    %c0_6 = arith.constant 0 : index
    %14 = vector.load %arg4[%c0_5, %c0_6] : memref<1x128xf32, #tpu.memory_space<vmem>>, vector<1x128xf32>
    %c0_7 = arith.constant 0 : index
    %c0_8 = arith.constant 0 : index
    %15 = vector.load %arg3[%c0_7, %c0_8] : memref<1x128xf32, #tpu.memory_space<vmem>>, vector<1x128xf32>
    %16 = vector.shape_cast %14 : vector<1x128xf32> to vector<1x128xf32>
    %17 = vector.broadcast %16 : vector<1x128xf32> to vector<8x128xf32>
    %18 = vector.shape_cast %15 : vector<1x128xf32> to vector<1x128xf32>
    %19 = vector.broadcast %18 : vector<1x128xf32> to vector<8x128xf32>
    %20 = arith.select %13, %17, %19 : vector<8x128xi1>, vector<8x128xf32>
    %cst_9 = arith.constant 1.000000e+00 : f32
    %21 = vector.broadcast %cst_9 : f32 to vector<8x128xf32>
    %22 = arith.cmpf ogt, %1, %21 : vector<8x128xf32>
    %cst_10 = arith.constant 0.000000e+00 : f32
    %23 = vector.broadcast %cst_10 : f32 to vector<8x128xf32>
    %24 = arith.select %22, %23, %20 : vector<8x128xi1>, vector<8x128xf32>
    %25 = arith.mulf %11, %24 : vector<8x128xf32>
    %true = arith.constant true
    %26 = vector.broadcast %true : i1 to vector<8x128xi1>
    %27 = tpu.iota {dimensions = array<i32: 1>} : vector<8x128xi32>
    %c26_i32 = arith.constant 26 : i32
    %28 = vector.broadcast %c26_i32 : i32 to vector<8x128xi32>
    %29 = arith.cmpi slt, %27, %28 : vector<8x128xi32>
    %30 = arith.andi %26, %29 : vector<8x128xi1>
    %31 = tpu.iota {dimensions = array<i32: 0>} : vector<8x128xi32>
    %c8_i32 = arith.constant 8 : i32
    %32 = arith.muli %arg0, %c8_i32 : i32
    %33 = vector.broadcast %32 : i32 to vector<8x128xi32>
    %34 = arith.addi %31, %33 : vector<8x128xi32>
    %c6_i32 = arith.constant 6 : i32
    %35 = vector.broadcast %c6_i32 : i32 to vector<8x128xi32>
    %36 = arith.cmpi slt, %34, %35 : vector<8x128xi32>
    %37 = arith.andi %30, %36 : vector<8x128xi1>
    %cst_11 = arith.constant 0.000000e+00 : f32
    %38 = vector.broadcast %cst_11 : f32 to vector<8x128xf32>
    %39 = arith.select %37, %25, %38 : vector<8x128xi1>, vector<8x128xf32>
    %c0_12 = arith.constant 0 : index
    %c0_13 = arith.constant 0 : index
    %40 = vector.load %arg5[%c0_12, %c0_13] : memref<8x128xf32, #tpu.memory_space<vmem>>, vector<8x128xf32>
    tpu.vector_store %arg5[%c0_12, %c0_13], %39 {strides = array<i32>} : memref<8x128xf32, #tpu.memory_space<vmem>>, vector<8x128xf32>,
    %41 = vector.shape_cast %39 : vector<8x128xf32> to vector<1x8x128xf32>
    %cst_14 = arith.constant dense<0.000000e+00> : vector<1xf32>
    %42 = vector.multi_reduction <add>, %41, %cst_14 [1, 2] : vector<1x8x128xf32> to vector<1xf32>
    %43 = vector.shape_cast %42 : vector<1xf32> to vector<1x1x1xf32>
    %44 = vector.extract %43[0, 0, 0] : f32 from vector<1x1x1xf32>
    %45 = vector.broadcast %44 : f32 to vector<1x8x128xf32>
    %c0_15 = arith.constant 0 : index
    %c0_16 = arith.constant 0 : index
    %c0_17 = arith.constant 0 : index
    %46 = vector.load %arg6[%c0_15, %c0_16, %c0_17] : memref<1x8x128xf32, #tpu.memory_space<vmem>>, vector<1x8x128xf32>
    tpu.vector_store %arg6[%c0_15, %c0_16, %c0_17], %45 {strides = array<i32>} : memref<1x8x128xf32, #tpu.memory_space<vmem>>, vector<1x8x128xf32>,
    return
  }
  func.func @transform_0(%arg0: i32) -> (i32, i32) {
    %c0_i32 = arith.constant 0 : i32
    %c0_i32_0 = arith.constant 0 : i32
    return %arg0, %c0_i32 : i32, i32
  }
  func.func @transform_1(%arg0: i32) -> (i32, i32) {
    %c0_i32 = arith.constant 0 : i32
    %c0_i32_0 = arith.constant 0 : i32
    return %arg0, %c0_i32 : i32, i32
  }
  func.func @transform_2(%arg0: i32) -> (i32, i32) {
    %c0_i32 = arith.constant 0 : i32
    %c0_i32_0 = arith.constant 0 : i32
    %c0_i32_1 = arith.constant 0 : i32
    return %c0_i32, %c0_i32_0 : i32, i32
  }
  func.func @transform_3(%arg0: i32) -> (i32, i32) {
    %c0_i32 = arith.constant 0 : i32
    %c0_i32_0 = arith.constant 0 : i32
    %c0_i32_1 = arith.constant 0 : i32
    return %c0_i32, %c0_i32_0 : i32, i32
  }
  func.func @transform_4(%arg0: i32) -> (i32, i32) {
    %c0_i32 = arith.constant 0 : i32
    %c0_i32_0 = arith.constant 0 : i32
    return %arg0, %c0_i32 : i32, i32
  }
  func.func @transform_5(%arg0: i32) -> (i32, i32, i32) {
    %c0_i32 = arith.constant 0 : i32
    %c0_i32_0 = arith.constant 0 : i32
    %c0_i32_1 = arith.constant 0 : i32
    return %arg0, %c0_i32, %c0_i32_0 : i32, i32, i32
  }
}

</mosaic_0001>

<llo_original>
// kernel: tpu_custom_call.1
$region0: #{tpu_custom_call.1}
  #allocation0 [shape = 'u32[]', space=smem, size = 0x4, offset = 0x4, fixed_abs, tag = 'smem constant byte address 0x4 - core index']
  #allocation1 [shape = 'u32[144,128]{1,0:T(1,128)}', space=vmem, size = 0x12000, scoped, tag = 'internal scratch']
  %s0 = inlined_call_operand.hbm [shape: f32[8,128], index: 0, kind: input, shape index: {}]
  %s1 = inlined_call_operand.hbm [shape: f32[8,128], index: 1, kind: input, shape index: {}]
  %s2 = inlined_call_operand.vmem [shape: f32[1,128], index: 2, kind: input, shape index: {}]
  %s3 = inlined_call_operand.vmem [shape: f32[1,128], index: 3, kind: input, shape index: {}]
  %s4 = inlined_call_operand.hbm [shape: f32[8,128], index: 4, kind: output, shape index: {0}]
  %s5 = inlined_call_operand.hbm [shape: f32[1,8,128], index: 5, kind: output, shape index: {1}]
  %6 = xla_tuple %s4, %s5
  %s7 = sld [smem:[#allocation0]]
  $region42: #{tpu_custom_call.1} parent=0
    _
  %s9 = ssub.s32 1, %s7
  %s10 = scalar_select 0, %s9, %s7
  $region1: #{tpu_custom_call.1} parent=0
    #allocation2 [shape = 'u8[4096]{0}', space=vmem, size = 0x1000, scoped, tag = 'input window, operand 0, single buffered']
    #allocation3 [shape = 's32[1]{0}', space=sflag, size = 0x4, scoped, tag = 'scoped memory for tpu_custom_call.1']
    #allocation4 [shape = 's32[1]{0}', space=sflag, size = 0x4, scoped, tag = 'scoped memory for tpu_custom_call.1']
    #allocation5 [shape = 'u8[4096]{0}', space=vmem, size = 0x1000, scoped, tag = 'input window, operand 1, single buffered']
    #allocation6 [shape = 's32[1]{0}', space=sflag, size = 0x4, scoped, tag = 'scoped memory for tpu_custom_call.1']
    #allocation7 [shape = 'u8[4096]{0}', space=vmem, size = 0x1000, scoped, tag = 'output window, operand 0, single buffered']
    #allocation8 [shape = 'u8[4096]{0}', space=vmem, size = 0x1000, scoped, tag = 'output window, operand 1, single buffered']
    #allocation9 [shape = 's32[1]{0}', space=sflag, size = 0x4, scoped, tag = 'scoped memory for tpu_custom_call.1']
    %11 = vsyncpa [#allocation3], 0
    %12 = vsyncpa [#allocation6], 0
    %13 = vsyncpa [#allocation4], 0
    %14 = vsyncpa [#allocation9], 0
    // Predicated region
    $region2: #{tpu_custom_call.1} parent=1 // pred_check
      _
    $region3: #{tpu_custom_call.1} parent=1 // pred_check_branch
      %16 = sbr.rel (0) target = $region5
    $region4: #{tpu_custom_call.1} parent=1 // pred_region
      %s18 = ssub.s32 128, 128
      %19 = vsyncadd [#allocation3], %s18
      %s21 = sshll.u32 [#allocation2], 4
      %s22 = int_to_ptr.vmem [resolvable:$true] %s21
      %24 = dma.hbm_to_vmem [thread:$0]  %s0, 128, %s22, [#allocation3]
    $region5: #{tpu_custom_call.1} parent=1 // pred_fallthru
      _
    // Predicated region
    $region6: #{tpu_custom_call.1} parent=1 // pred_check
      _
    $region7: #{tpu_custom_call.1} parent=1 // pred_check_branch
      %26 = sbr.rel (0) target = $region9
    $region8: #{tpu_custom_call.1} parent=1 // pred_region
      %s28 = ssub.s32 128, 128
      %29 = vsyncadd [#allocation6], %s28
      %s31 = sshll.u32 [#allocation5], 4
      %s32 = int_to_ptr.vmem [resolvable:$true] %s31
      %34 = dma.hbm_to_vmem [thread:$0]  %s1, 128, %s32, [#allocation6]
    $region9: #{tpu_custom_call.1} parent=1 // pred_fallthru
      _
    // Predicated region
    $region10: #{tpu_custom_call.1} parent=1 // pred_check
      _
    $region11: #{tpu_custom_call.1} parent=1 // pred_check_branch
      %36 = sbr.rel (0) target = $region13
    $region12: #{tpu_custom_call.1} parent=1 // pred_region
      _
    $region13: #{tpu_custom_call.1} parent=1 // pred_fallthru
      _
    // Predicated region
    $region14: #{tpu_custom_call.1} parent=1 // pred_check
      _
    $region15: #{tpu_custom_call.1} parent=1 // pred_check_branch
      %38 = sbr.rel (0) target = $region17
    $region16: #{tpu_custom_call.1} parent=1 // pred_region
      _
    $region17: #{tpu_custom_call.1} parent=1 // pred_fallthru
      _
    // Predicated region
    $region18: #{tpu_custom_call.1} parent=1 // pred_check
      _
    $region19: #{tpu_custom_call.1} parent=1 // pred_check_branch
      %40 = sbr.rel (0) target = $region21
    $region20: #{tpu_custom_call.1} parent=1 // pred_region
      %41 = dma.done [#allocation3], 128
    $region21: #{tpu_custom_call.1} parent=1 // pred_fallthru
      _
    // Predicated region
    $region22: #{tpu_custom_call.1} parent=1 // pred_check
      _
    $region23: #{tpu_custom_call.1} parent=1 // pred_check_branch
      %43 = sbr.rel (0) target = $region25
    $region24: #{tpu_custom_call.1} parent=1 // pred_region
      %44 = dma.done [#allocation6], 128
    $region25: #{tpu_custom_call.1} parent=1 // pred_fallthru
      _
    %v45 = vld [vmem:[#allocation2] sm:$0xff]
    %v46 = vld [vmem:[#allocation5] sm:$0xff]
    %v47 = vmax.f32 %v45, 0.0
    %v48 = vmul.f32 %v45, %v46
    %v49 = vsub.f32 %v47, %v48
    %v50 = vand.u32 2147483647, %v45
    %v51 = vsub.f32 0.0, %v50
    %v52 = vmul.f32 %v51, 1.442695
    %v53 = vpow.pop %v52
    %v54 = vadd.f32 %v53, 1.0
    %v55 = vlog2.pop %v54
    %v56 = vmul.f32 %v55, 0.6931472
    %v57 = vmul.f32 -0.5, %v53
    %v58 = vadd.f32 %v57, 1.0
    %v59 = vmul.f32 %v58, %v53
    %v60 = vand.u32 2147483647, %v53
    %vm61 = vcmp.lt.f32.partialorder %v60, 0.0004427343
    %v62 = vsel %vm61, %v59, %v56
    %v63 = vadd.f32 %v49, %v62
    %vm64 = vcmp.gt.f32.partialorder %v46, 0.5
    %v65 = vld [vmem:[%s3] sm:$0x1]
    %v66 = vld [vmem:[%s2] sm:$0x1]
    %v68 = vlaneseq
    %v69 = vshrl.u32 %v68, 7
    %v70 = vsub.s32 0, %v69
    %v71 = vrot.slane %v65, %v70
    %v74 = vlaneseq
    %v75 = vshrl.u32 %v74, 7
    %v76 = vsub.s32 0, %v75
    %v77 = vrot.slane %v66, %v76
    %v79 = vsel %vm64, %v71, %v77
    %vm80 = vcmp.gt.f32.partialorder %v46, 1.0
    %v81 = vsel %vm80, 0.0, %v79
    %v82 = vmul.f32 %v63, %v81
    %v83 = vlaneseq
    %v84 = vand.u32 %v83, 127
    %vm85 = vcmp.lt.s32.totalorder %v84, 26
    %v86 = vlaneseq
    %v87 = vshrl.u32 %v86, 7
    %s88 = smul.u32 0, 8
    %v89 = vstv %s88
    %v90 = vadd.s32 %v87, %v89
    %vm91 = vcmp.lt.s32.totalorder %v90, 6
    %vm92 = vmand %vm85, %vm91
    %v93 = vsel %vm92, %v82, 0.0
    %94 = vst [vmem:[#allocation7] sm:$0xff] %v93
    %95 = vadd.xlane.f32.xlu0 %v93
    %v96 = vpop.xlane.xlu0 %95
    %v97 = vrot.slane %v96, 4
    %v98 = vadd.f32 %v96, %v97
    %v99 = vrot.slane %v98, 2
    %v100 = vadd.f32 %v98, %v99
    %v101 = vrot.slane %v100, 1
    %v102 = vadd.f32 %v100, %v101
    %s103 = vtos %v102
    %v104 = vstv %s103
    %105 = vst [vmem:[#allocation8] sm:$0xff] %v104
    // Predicated region
    $region26: #{tpu_custom_call.1} parent=1 // pred_check
      _
    $region27: #{tpu_custom_call.1} parent=1 // pred_check_branch
      %107 = sbr.rel (0) target = $region29
    $region28: #{tpu_custom_call.1} parent=1 // pred_region
      %s109 = ssub.s32 128, 128
      %110 = vsyncadd [#allocation4], %s109
      %s112 = sshll.u32 [#allocation7], 4
      %s113 = int_to_ptr.vmem [resolvable:$true] %s112
      %115 = dma.vmem_to_hbm [thread:$0]  %s113, 128, %s4, [#allocation4]
    $region29: #{tpu_custom_call.1} parent=1 // pred_fallthru
      _
    // Predicated region
    $region30: #{tpu_custom_call.1} parent=1 // pred_check
      _
    $region31: #{tpu_custom_call.1} parent=1 // pred_check_branch
      %117 = sbr.rel (0) target = $region33
    $region32: #{tpu_custom_call.1} parent=1 // pred_region
      %s119 = ssub.s32 128, 128
      %120 = vsyncadd [#allocation9], %s119
      %s122 = sshll.u32 [#allocation8], 4
      %s123 = int_to_ptr.vmem [resolvable:$true] %s122
      %125 = dma.vmem_to_hbm [thread:$0]  %s123, 128, %s5, [#allocation9]
    $region33: #{tpu_custom_call.1} parent=1 // pred_fallthru
      _
    // Predicated region
    $region34: #{tpu_custom_call.1} parent=1 // pred_check
      _
    $region35: #{tpu_custom_call.1} parent=1 // pred_check_branch
      %127 = sbr.rel (0) target = $region37
    $region36: #{tpu_custom_call.1} parent=1 // pred_region
      %128 = dma.done [#allocation4], 128
    $region37: #{tpu_custom_call.1} parent=1 // pred_fallthru
      _
    // Predicated region
    $region38: #{tpu_custom_call.1} parent=1 // pred_check
      _
    $region39: #{tpu_custom_call.1} parent=1 // pred_check_branch
      %130 = sbr.rel (0) target = $region41
    $region40: #{tpu_custom_call.1} parent=1 // pred_region
      %131 = dma.done [#allocation9], 128
    $region41: #{tpu_custom_call.1} parent=1 // pred_fallthru
      _
    %132 = vsyncpa [#allocation3], 1
    %133 = vsyncpa [#allocation6], 1
    %134 = vsyncpa [#allocation4], 1
    %135 = vsyncpa [#allocation9], 1

</llo_original>
